<compile_context>
chip_gen: v7x
topology: tpu7x:2x2x1
jax: 0.10.0
libtpu: 0.0.40
codegen_flags: <defaults>
</compile_context>

<pallas_src>
import jax
import jax.numpy as jnp
from jax.experimental import pallas as pl
from jax.experimental.pallas import tpu as pltpu


def critic_kernel(x_ref, w1t_ref, b1_ref, w2t_ref, b2_ref, w3_ref, b3_ref, o_ref):
    # x: (S, TB) f32, batch on the lane axis.  bf16 at the dot only.
    x = x_ref[...].astype(jnp.bfloat16)                                    # (S, TB)

    # Layer 1: relu(W1 x + b1) as (H,S)@(S,TB) -> (H,TB), f32 accumulate.
    h1 = jnp.dot(w1t_ref[...], x, preferred_element_type=jnp.float32)      # (H, TB)
    h1 = jnp.maximum(h1 + b1_ref[...], 0.0)

    # Layer 2: relu(W2 h1 + b2).
    h2 = jnp.dot(w2t_ref[...], h1.astype(jnp.bfloat16),
                 preferred_element_type=jnp.float32)                       # (H, TB)
    h2 = jnp.maximum(h2 + b2_ref[...], 0.0)

    # Value head: (1,H)@(H,TB) -> (1,TB); lane-dense store.
    v = jnp.dot(w3_ref[...], h2.astype(jnp.bfloat16),
                preferred_element_type=jnp.float32)                        # (1, TB)
    o_ref[...] = v + b3_ref[...]


def critic_forward(state, params, *, tile_b=None):
    """state: (B, state_dim) float32.  Returns (B, 1) float32."""
    w1, b1, w2, b2, w3, b3 = params
    B, S = state.shape
    H = w1.shape[1]

    if tile_b is None:
        # One fat step by default (v5e/v6e: single TensorCore — multiple grid
        # steps only add per-step overhead for an ~8 KB state DMA).
        # On v7x, pass tile_b ~= round_up(cdiv(B, 2), 256) so the "parallel"
        # batch axis spans both TensorCores.
        tile_b = min(4096, max(128, pl.cdiv(B, 128) * 128))

    num_tiles = pl.cdiv(B, tile_b)

    bf16 = jnp.bfloat16
    # One-time layout work (outside the grid loop); weights stay VMEM-resident
    # across all grid steps via constant index_maps.
    # TODO(synk): if the upstream producer can emit state as (S, B) bf16
    # directly, drop this transpose and the in-kernel cast.
    x_t = state.T                          # (S, B): batch -> 128-lane axis
    w1t = w1.T.astype(bf16)                # (H, S)
    w2t = w2.T.astype(bf16)                # (H, H)
    w3r = w3.reshape(1, H).astype(bf16)    # (1, H) value-head row
    b1c = b1.reshape(H, 1).astype(jnp.float32)
    b2c = b2.reshape(H, 1).astype(jnp.float32)
    b3c = b3.reshape(1, 1).astype(jnp.float32)

    flops = 2 * B * (S * H + H * H + H)
    bytes_accessed = (B * S * 4 + w1t.size * 2 + w2t.size * 2 + w3r.size * 2
                      + (2 * H + 1) * 4 + B * 4)

    out = pl.pallas_call(
        critic_kernel,
        out_shape=jax.ShapeDtypeStruct((1, B), jnp.float32),
        grid=(num_tiles,),
        in_specs=[
            pl.BlockSpec((S, tile_b), lambda i: (0, i)),   # state tile (pipelined)
            pl.BlockSpec((H, S), lambda i: (0, 0)),        # W1^T (VMEM-resident)
            pl.BlockSpec((H, 1), lambda i: (0, 0)),        # b1
            pl.BlockSpec((H, H), lambda i: (0, 0)),        # W2^T
            pl.BlockSpec((H, 1), lambda i: (0, 0)),        # b2
            pl.BlockSpec((1, H), lambda i: (0, 0)),        # w3 row
            pl.BlockSpec((1, 1), lambda i: (0, 0)),        # b3
        ],
        out_specs=pl.BlockSpec((1, tile_b), lambda i: (0, i)),
        compiler_params=pltpu.CompilerParams(
            dimension_semantics=("parallel",)),
        cost_estimate=pl.CostEstimate(
            flops=flops, transcendentals=0, bytes_accessed=bytes_accessed),
    )(x_t, w1t, b1c, w2t, b2c, w3r, b3c)

    return out.reshape(B, 1)


def init_params(key, state_dim, hidden_dim=64):
    """Deterministic init mimicking nn.Linear's uniform(-1/sqrt(fan_in), ...)."""
    ks = jax.random.split(key, 6)

    def linear(kw, kb, fan_in, fan_out):
        bound = 1.0 / jnp.sqrt(float(fan_in))
        w = jax.random.uniform(kw, (fan_in, fan_out), jnp.float32, -bound, bound)
        b = jax.random.uniform(kb, (1, fan_out), jnp.float32, -bound, bound)
        return w, b

    w1, b1 = linear(ks[0], ks[1], state_dim, hidden_dim)
    w2, b2 = linear(ks[2], ks[3], hidden_dim, hidden_dim)
    w3, b3 = linear(ks[4], ks[5], hidden_dim, 1)
    return (w1, b1, w2, b2, w3, b3)


def critic_reference(state, params):
    """Reference mirroring the kernel's bf16-at-the-dot / f32-accumulate math."""
    w1, b1, w2, b2, w3, b3 = params
    bf16 = jnp.bfloat16
    h1 = jnp.maximum(
        jnp.dot(state.astype(bf16), w1.astype(bf16),
                preferred_element_type=jnp.float32) + b1, 0.0)
    h2 = jnp.maximum(
        jnp.dot(h1.astype(bf16), w2.astype(bf16),
                preferred_element_type=jnp.float32) + b2, 0.0)
    return jnp.dot(h2.astype(bf16), w3.astype(bf16),
                   preferred_element_type=jnp.float32) + b3


if __name__ == "__main__":
    key = jax.random.PRNGKey(0)
    k_params, k_state = jax.random.split(key)

    batch, state_dim, hidden_dim = 256, 8, 64
    params = init_params(k_params, state_dim, hidden_dim)
    state = jax.random.normal(k_state, (batch, state_dim), jnp.float32)

    # Default: one fat grid step (v5e/v6e-friendly).
    out = jax.block_until_ready(critic_forward(state, params))
    # Explicit 2-step parallel grid (what you'd pick on v7x: ~B/2 per TC).
    out2 = jax.block_until_ready(critic_forward(state, params, tile_b=128))

    ref = critic_reference(state, params)
    assert out.shape == (batch, 1)
    assert jnp.allclose(out, ref, atol=1e-3, rtol=1e-3)
    assert jnp.allclose(out2, ref, atol=1e-3, rtol=1e-3)

    print("KERNEL_OK")
</pallas_src>

<mosaic_0001>
module attributes {stable_mosaic.version = 11 : i64} {
  func.func @critic_kernel(%arg0: i32, %arg1: memref<8x256xf32, #tpu.memory_space<vmem>>, %arg2: memref<64x8xbf16, #tpu.memory_space<vmem>>, %arg3: memref<64x1xf32, #tpu.memory_space<vmem>>, %arg4: memref<64x64xbf16, #tpu.memory_space<vmem>>, %arg5: memref<64x1xf32, #tpu.memory_space<vmem>>, %arg6: memref<1x64xbf16, #tpu.memory_space<vmem>>, %arg7: memref<1x1xf32, #tpu.memory_space<vmem>>, %arg8: memref<1x256xf32, #tpu.memory_space<vmem>>) attributes {dimension_semantics = [#tpu.dimension_semantics<parallel>], iteration_bounds = array<i64: 1>, scalar_prefetch = 0 : i64, scratch_operands = 0 : i64, tpu.core_type = #tpu.core_type<tc>, window_params = [{transform_indices = @transform_0, window_bounds = array<i64: 8, 256>}, {pipeline_mode = #tpu.pipeline_mode<synchronous>, transform_indices = @transform_1, window_bounds = array<i64: 64, 8>}, {pipeline_mode = #tpu.pipeline_mode<synchronous>, transform_indices = @transform_2, window_bounds = array<i64: 64, 1>}, {pipeline_mode = #tpu.pipeline_mode<synchronous>, transform_indices = @transform_3, window_bounds = array<i64: 64, 64>}, {pipeline_mode = #tpu.pipeline_mode<synchronous>, transform_indices = @transform_4, window_bounds = array<i64: 64, 1>}, {pipeline_mode = #tpu.pipeline_mode<synchronous>, transform_indices = @transform_5, window_bounds = array<i64: 1, 64>}, {pipeline_mode = #tpu.pipeline_mode<synchronous>, transform_indices = @transform_6, window_bounds = array<i64: 1, 1>}, {transform_indices = @transform_7, window_bounds = array<i64: 1, 256>}]} {
    %c0 = arith.constant 0 : index
    %c0_0 = arith.constant 0 : index
    %0 = vector.load %arg1[%c0, %c0_0] : memref<8x256xf32, #tpu.memory_space<vmem>>, vector<8x256xf32>
    %1 = arith.truncf %0 : vector<8x256xf32> to vector<8x256xbf16>
    %c0_1 = arith.constant 0 : index
    %c0_2 = arith.constant 0 : index
    %2 = vector.load %arg2[%c0_1, %c0_2] : memref<64x8xbf16, #tpu.memory_space<vmem>>, vector<64x8xbf16>
    %cst = arith.constant dense<0.000000e+00> : vector<64x256xf32>
    %3 = tpu.matmul %2, %1, %cst {dimension_numbers = #tpu.dot_dimension_numbers<[1], [0], [0], [1], [0, 0, 1, 1], [], []>} : vector<64x8xbf16>, vector<8x256xbf16>, vector<64x256xf32> -> vector<64x256xf32>
    %c0_3 = arith.constant 0 : index
    %c0_4 = arith.constant 0 : index
    %4 = vector.load %arg3[%c0_3, %c0_4] : memref<64x1xf32, #tpu.memory_space<vmem>>, vector<64x1xf32>
    %5 = vector.broadcast %4 : vector<64x1xf32> to vector<64x256xf32>
    %6 = arith.addf %3, %5 : vector<64x256xf32>
    %cst_5 = arith.constant 0.000000e+00 : f32
    %7 = vector.broadcast %cst_5 : f32 to vector<64x256xf32>
    %8 = arith.maximumf %6, %7 : vector<64x256xf32>
    %c0_6 = arith.constant 0 : index
    %c0_7 = arith.constant 0 : index
    %9 = vector.load %arg4[%c0_6, %c0_7] : memref<64x64xbf16, #tpu.memory_space<vmem>>, vector<64x64xbf16>
    %10 = arith.truncf %8 : vector<64x256xf32> to vector<64x256xbf16>
    %cst_8 = arith.constant dense<0.000000e+00> : vector<64x256xf32>
    %11 = tpu.matmul %9, %10, %cst_8 {dimension_numbers = #tpu.dot_dimension_numbers<[1], [0], [0], [1], [0, 0, 1, 1], [], []>} : vector<64x64xbf16>, vector<64x256xbf16>, vector<64x256xf32> -> vector<64x256xf32>
    %c0_9 = arith.constant 0 : index
    %c0_10 = arith.constant 0 : index
    %12 = vector.load %arg5[%c0_9, %c0_10] : memref<64x1xf32, #tpu.memory_space<vmem>>, vector<64x1xf32>
    %13 = vector.broadcast %12 : vector<64x1xf32> to vector<64x256xf32>
    %14 = arith.addf %11, %13 : vector<64x256xf32>
    %cst_11 = arith.constant 0.000000e+00 : f32
    %15 = vector.broadcast %cst_11 : f32 to vector<64x256xf32>
    %16 = arith.maximumf %14, %15 : vector<64x256xf32>
    %c0_12 = arith.constant 0 : index
    %c0_13 = arith.constant 0 : index
    %17 = vector.load %arg6[%c0_12, %c0_13] : memref<1x64xbf16, #tpu.memory_space<vmem>>, vector<1x64xbf16>
    %18 = arith.truncf %16 : vector<64x256xf32> to vector<64x256xbf16>
    %cst_14 = arith.constant dense<0.000000e+00> : vector<1x256xf32>
    %19 = tpu.matmul %17, %18, %cst_14 {dimension_numbers = #tpu.dot_dimension_numbers<[1], [0], [0], [1], [0, 0, 1, 1], [], []>} : vector<1x64xbf16>, vector<64x256xbf16>, vector<1x256xf32> -> vector<1x256xf32>
    %c0_15 = arith.constant 0 : index
    %c0_16 = arith.constant 0 : index
    %20 = vector.load %arg7[%c0_15, %c0_16] : memref<1x1xf32, #tpu.memory_space<vmem>>, vector<1x1xf32>
    %21 = vector.broadcast %20 : vector<1x1xf32> to vector<1x256xf32>
    %22 = arith.addf %19, %21 : vector<1x256xf32>
    %c0_17 = arith.constant 0 : index
    %c0_18 = arith.constant 0 : index
    %23 = vector.load %arg8[%c0_17, %c0_18] : memref<1x256xf32, #tpu.memory_space<vmem>>, vector<1x256xf32>
    tpu.vector_store %arg8[%c0_17, %c0_18], %22 {strides = array<i32>} : memref<1x256xf32, #tpu.memory_space<vmem>>, vector<1x256xf32>,
    return
  }
  func.func @transform_0(%arg0: i32) -> (i32, i32) {
    %c0_i32 = arith.constant 0 : i32
    %c0_i32_0 = arith.constant 0 : i32
    return %c0_i32, %arg0 : i32, i32
  }
  func.func @transform_1(%arg0: i32) -> (i32, i32) {
    %c0_i32 = arith.constant 0 : i32
    %c0_i32_0 = arith.constant 0 : i32
    %c0_i32_1 = arith.constant 0 : i32
    return %c0_i32, %c0_i32_0 : i32, i32
  }
  func.func @transform_2(%arg0: i32) -> (i32, i32) {
    %c0_i32 = arith.constant 0 : i32
    %c0_i32_0 = arith.constant 0 : i32
    %c0_i32_1 = arith.constant 0 : i32
    return %c0_i32, %c0_i32_0 : i32, i32
  }
  func.func @transform_3(%arg0: i32) -> (i32, i32) {
    %c0_i32 = arith.constant 0 : i32
    %c0_i32_0 = arith.constant 0 : i32
    %c0_i32_1 = arith.constant 0 : i32
    return %c0_i32, %c0_i32_0 : i32, i32
  }
  func.func @transform_4(%arg0: i32) -> (i32, i32) {
    %c0_i32 = arith.constant 0 : i32
    %c0_i32_0 = arith.constant 0 : i32
    %c0_i32_1 = arith.constant 0 : i32
    return %c0_i32, %c0_i32_0 : i32, i32
  }
  func.func @transform_5(%arg0: i32) -> (i32, i32) {
    %c0_i32 = arith.constant 0 : i32
    %c0_i32_0 = arith.constant 0 : i32
    %c0_i32_1 = arith.constant 0 : i32
    return %c0_i32, %c0_i32_0 : i32, i32
  }
  func.func @transform_6(%arg0: i32) -> (i32, i32) {
    %c0_i32 = arith.constant 0 : i32
    %c0_i32_0 = arith.constant 0 : i32
    %c0_i32_1 = arith.constant 0 : i32
    return %c0_i32, %c0_i32_0 : i32, i32
  }
  func.func @transform_7(%arg0: i32) -> (i32, i32) {
    %c0_i32 = arith.constant 0 : i32
    %c0_i32_0 = arith.constant 0 : i32
    return %c0_i32, %arg0 : i32, i32
  }
}

</mosaic_0001>

<llo_original>
// kernel: tpu_custom_call.1
$region0: #{tpu_custom_call.1}
  #allocation0 [shape = 'u32[]', space=smem, size = 0x4, offset = 0x4, fixed_abs, tag = 'smem constant byte address 0x4 - core index']
  #allocation1 [shape = 'u32[144,128]{1,0:T(1,128)}', space=vmem, size = 0x12000, scoped, tag = 'internal scratch']
  #allocation2 [shape = 'f32[1,1]{1,0:T(1,128)S(1)}', space=vmem, size = 0x200, scoped, tag = 'scoped memory for tpu_custom_call.1']
  %s0 = inlined_call_operand.vmem [shape: f32[8,256], index: 0, kind: input, shape index: {}]
  %s1 = inlined_call_operand.vmem [shape: bf16[64,8], index: 1, kind: input, shape index: {}]
  %s2 = inlined_call_operand.vmem [shape: f32[64,1], index: 2, kind: input, shape index: {}]
  %s3 = inlined_call_operand.vmem [shape: bf16[64,64], index: 3, kind: input, shape index: {}]
  %s4 = inlined_call_operand.vmem [shape: f32[64,1], index: 4, kind: input, shape index: {}]
  %s5 = inlined_call_operand.vmem [shape: bf16[1,64], index: 5, kind: input, shape index: {}]
  %s6 = inlined_call_operand.<no memory space> [shape: f32[1,1], index: 6, kind: input, shape index: {}]
  %s7 = inlined_call_operand.hbm [shape: f32[1,256], index: 7, kind: output, shape index: {}]
  %s8 = sld [smem:[#allocation0]]
  $region38: #{tpu_custom_call.1} parent=0
    _
  %s10 = ssub.s32 1, %s8
  %s11 = scalar_select 0, %s10, %s8
  %v12 = vstv %s6
  %13 = vst [vmem:[#allocation2] sm:$0x1] %v12
  $region1: #{tpu_custom_call.1} parent=0
    #allocation3 [shape = 'u8[1024]{0}', space=vmem, size = 0x400, scoped, tag = 'output window, operand 0, single buffered']
    #allocation4 [shape = 's32[1]{0}', space=sflag, size = 0x4, scoped, tag = 'scoped memory for tpu_custom_call.1']
    %14 = vsyncpa [#allocation4], 0
    // Predicated region
    $region2: #{tpu_custom_call.1} parent=1 // pred_check
      _
    $region3: #{tpu_custom_call.1} parent=1 // pred_check_branch
      %16 = sbr.rel (0) target = $region5
    $region4: #{tpu_custom_call.1} parent=1 // pred_region
      _
    $region5: #{tpu_custom_call.1} parent=1 // pred_fallthru
      _
    // Predicated region
    $region6: #{tpu_custom_call.1} parent=1 // pred_check
      _
    $region7: #{tpu_custom_call.1} parent=1 // pred_check_branch
      %18 = sbr.rel (0) target = $region9
    $region8: #{tpu_custom_call.1} parent=1 // pred_region
      _
    $region9: #{tpu_custom_call.1} parent=1 // pred_fallthru
      _
    // Predicated region
    $region10: #{tpu_custom_call.1} parent=1 // pred_check
      _
    $region11: #{tpu_custom_call.1} parent=1 // pred_check_branch
      %20 = sbr.rel (0) target = $region13
    $region12: #{tpu_custom_call.1} parent=1 // pred_region
      _
    $region13: #{tpu_custom_call.1} parent=1 // pred_fallthru
      _
    // Predicated region
    $region14: #{tpu_custom_call.1} parent=1 // pred_check
      _
    $region15: #{tpu_custom_call.1} parent=1 // pred_check_branch
      %22 = sbr.rel (0) target = $region17
    $region16: #{tpu_custom_call.1} parent=1 // pred_region
      _
    $region17: #{tpu_custom_call.1} parent=1 // pred_fallthru
      _
    // Predicated region
    $region18: #{tpu_custom_call.1} parent=1 // pred_check
      _
    $region19: #{tpu_custom_call.1} parent=1 // pred_check_branch
      %24 = sbr.rel (0) target = $region21
    $region20: #{tpu_custom_call.1} parent=1 // pred_region
      _
    $region21: #{tpu_custom_call.1} parent=1 // pred_fallthru
      _
    // Predicated region
    $region22: #{tpu_custom_call.1} parent=1 // pred_check
      _
    $region23: #{tpu_custom_call.1} parent=1 // pred_check_branch
      %26 = sbr.rel (0) target = $region25
    $region24: #{tpu_custom_call.1} parent=1 // pred_region
      _
    $region25: #{tpu_custom_call.1} parent=1 // pred_fallthru
      _
    // Predicated region
    $region26: #{tpu_custom_call.1} parent=1 // pred_check
      _
    $region27: #{tpu_custom_call.1} parent=1 // pred_check_branch
      %28 = sbr.rel (0) target = $region29
    $region28: #{tpu_custom_call.1} parent=1 // pred_region
      _
    $region29: #{tpu_custom_call.1} parent=1 // pred_fallthru
      _
    %v30 = vld [vmem:[%s0] sm:$0xff]
    %v31 = vld [vmem:[%s0 + $0x8] sm:$0xff]
    %v32 = vpack.c.bf16 %v30, %v30
    %v33 = vpack.c.bf16 %v31, %v31
    %v34 = vld [vmem:[%s1] sm:$0xf]
    %v35 = vld [vmem:[%s1 + $0x4] sm:$0xf]
    %v36 = vld [vmem:[%s1 + $0x8] sm:$0xf]
    %v37 = vld [vmem:[%s1 + $0xc] sm:$0xf]
    %v38 = vld [vmem:[%s1 + $0x10] sm:$0xf]
    %v39 = vld [vmem:[%s1 + $0x14] sm:$0xf]
    %v40 = vld [vmem:[%s1 + $0x18] sm:$0xf]
    %v41 = vld [vmem:[%s1 + $0x1c] sm:$0xf]
    %v42 = vld [vmem:[%s2] sm:$0xff]
    %v43 = vld [vmem:[%s2 + $0x8] sm:$0xff]
    %v44 = vld [vmem:[%s2 + $0x10] sm:$0xff]
    %v45 = vld [vmem:[%s2 + $0x18] sm:$0xff]
    %v46 = vld [vmem:[%s2 + $0x20] sm:$0xff]
    %v47 = vld [vmem:[%s2 + $0x28] sm:$0xff]
    %v48 = vld [vmem:[%s2 + $0x30] sm:$0xff]
    %v49 = vld [vmem:[%s2 + $0x38] sm:$0xff]
    %51 = vset.pattern.permute.xlu0 0
    %52 = vperm.xlu0 %51, %v42
    %v53 = vpop.permute.xlu0 %52
    %56 = vset.pattern.permute.xlu0 0
    %57 = vperm.xlu0 %56, %v43
    %v58 = vpop.permute.xlu0 %57
    %61 = vset.pattern.permute.xlu0 0
    %62 = vperm.xlu0 %61, %v44
    %v63 = vpop.permute.xlu0 %62
    %66 = vset.pattern.permute.xlu0 0
    %67 = vperm.xlu0 %66, %v45
    %v68 = vpop.permute.xlu0 %67
    %71 = vset.pattern.permute.xlu0 0
    %72 = vperm.xlu0 %71, %v46
    %v73 = vpop.permute.xlu0 %72
    %76 = vset.pattern.permute.xlu0 0
    %77 = vperm.xlu0 %76, %v47
    %v78 = vpop.permute.xlu0 %77
    %81 = vset.pattern.permute.xlu0 0
    %82 = vperm.xlu0 %81, %v48
    %v83 = vpop.permute.xlu0 %82
    %86 = vset.pattern.permute.xlu0 0
    %87 = vperm.xlu0 %86, %v49
    %v88 = vpop.permute.xlu0 %87
    %v98 = vunpack.c.l.b16 %v34
    %v99 = vunpack.c.l.b16 %v35
    %v100 = vunpack.c.l.b16 %v36
    %v101 = vunpack.c.l.b16 %v37
    %v102 = vunpack.c.l.b16 %v38
    %v103 = vunpack.c.l.b16 %v39
    %v104 = vunpack.c.l.b16 %v40
    %v105 = vunpack.c.l.b16 %v41
    %v106 = vpack.c.b16 %v99, %v98
    %v107 = vpack.c.b16 %v101, %v100
    %v108 = vpack.c.b16 %v103, %v102
    %v109 = vpack.c.b16 %v105, %v104
    %vm110 = vcmask 64512
    %v112 = vsel %vm110, %v106, 0
    %v115 = vsel %vm110, %v107, 0
    %v118 = vsel %vm110, %v108, 0
    %v121 = vsel %vm110, %v109, 0
    %vm123 = vcmask 1043456
    %v125 = vsel %vm123, %v32, 0
    %v128 = vsel %vm123, %v33, 0
    %130 = vmatprep.subr.bf16.mxu0 %v128
    %131 = vmatpush1.bf16.msra.mxu0 %v125
    %132 = vmatprep.subr.bf16.mxu0 0
    %133 = vmatpush1.bf16.msra.mxu0 0
    %134 = vmatprep.subr.bf16.mxu0 0
    %135 = vmatpush1.bf16.msra.mxu0 0
    %136 = vmatprep.subr.bf16.mxu0 0
    %137 = vmatpush1.bf16.msra.mxu0 0
    %138 = vmatprep.subr.bf16.mxu0 0
    %139 = vmatpush1.bf16.msra.mxu0 0
    %140 = vmatprep.subr.bf16.mxu0 0
    %141 = vmatpush1.bf16.msra.mxu0 0
    %142 = vmatprep.subr.bf16.mxu0 0
    %143 = vmatpush1.bf16.msra.mxu0 0
    %144 = vmatprep.subr.bf16.mxu0 0
    %145 = vmatpush1.bf16.msra.mxu0 0
    %146 = vmatprep.subr.bf16.mxu0 0
    %147 = vmatpush1.bf16.msra.mxu0 0
    %148 = vmatprep.subr.bf16.mxu0 0
    %149 = vmatpush1.bf16.msra.mxu0 0
    %150 = vmatprep.subr.bf16.mxu0 0
    %151 = vmatpush1.bf16.msra.mxu0 0
    %152 = vmatprep.subr.bf16.mxu0 0
    %153 = vmatpush1.bf16.msra.mxu0 0
    %154 = vmatprep.subr.bf16.mxu0 0
    %155 = vmatpush1.bf16.msra.mxu0 0
    %156 = vmatprep.subr.bf16.mxu0 0
    %157 = vmatpush1.bf16.msra.mxu0 0
    %158 = vmatprep.subr.bf16.mxu0 0
    %159 = vmatpush1.bf16.msra.mxu0 0
    %160 = vmatprep.subr.bf16.mxu0 0
    %161 = vmatpush1.bf16.msra.mxu0 0
    %162 = vmatprep.mubr.bf16.mxu0 0
    %163 = vmatmul.mubr.bf16.gmra.mrb[0].mxu0 %v112
    %v164 = vpop.f32.mrb[0].mxu0
    %v165 = vadd.f32 %v53, %v164
    %v166 = vpop.f32.mrb[0].mxu0
    %v167 = vadd.f32 %v53, %v166
    %v168 = vpop.f32.mrb[0].mxu0
    %v169 = vadd.f32 %v58, %v168
    %v170 = vpop.f32.mrb[0].mxu0
    %v171 = vadd.f32 %v58, %v170
    %172 = vmatprep.mubr.bf16.mxu0 0
    %173 = vmatmul.mubr.bf16.gmra.mrb[0].mxu0 %v115
    %v174 = vpop.f32.mrb[0].mxu0
    %v175 = vadd.f32 %v63, %v174
    %v176 = vpop.f32.mrb[0].mxu0
    %v177 = vadd.f32 %v63, %v176
    %v178 = vpop.f32.mrb[0].mxu0
    %v179 = vadd.f32 %v68, %v178
    %v180 = vpop.f32.mrb[0].mxu0
    %v181 = vadd.f32 %v68, %v180
    %182 = vmatprep.mubr.bf16.mxu0 0
    %183 = vmatmul.mubr.bf16.gmra.mrb[0].mxu0 %v118
    %v184 = vpop.f32.mrb[0].mxu0
    %v185 = vadd.f32 %v73, %v184
    %v186 = vpop.f32.mrb[0].mxu0
    %v187 = vadd.f32 %v73, %v186
    %v188 = vpop.f32.mrb[0].mxu0
    %v189 = vadd.f32 %v78, %v188
    %v190 = vpop.f32.mrb[0].mxu0
    %v191 = vadd.f32 %v78, %v190
    %192 = vmatprep.mubr.bf16.mxu0 0
    %193 = vmatmul.mubr.bf16.gmra.mrb[0].mxu0 %v121
    %v194 = vpop.f32.mrb[0].mxu0
    %v195 = vadd.f32 %v83, %v194
    %v196 = vpop.f32.mrb[0].mxu0
    %v197 = vadd.f32 %v83, %v196
    %v198 = vpop.f32.mrb[0].mxu0
    %v199 = vadd.f32 %v88, %v198
    %v200 = vpop.f32.mrb[0].mxu0
    %v201 = vadd.f32 %v88, %v200
    %202 = vdwg.mxu0
    %v203 = vmax.f32 %v165, 0.0
    %v204 = vmax.f32 %v167, 0.0
    %v205 = vmax.f32 %v169, 0.0
    %v206 = vmax.f32 %v171, 0.0
    %v207 = vmax.f32 %v175, 0.0
    %v208 = vmax.f32 %v177, 0.0
    %v209 = vmax.f32 %v179, 0.0
    %v210 = vmax.f32 %v181, 0.0
    %v211 = vmax.f32 %v185, 0.0
    %v212 = vmax.f32 %v187, 0.0
    %v213 = vmax.f32 %v189, 0.0
    %v214 = vmax.f32 %v191, 0.0
    %v215 = vmax.f32 %v195, 0.0
    %v216 = vmax.f32 %v197, 0.0
    %v217 = vmax.f32 %v199, 0.0
    %v218 = vmax.f32 %v201, 0.0
    %v219 = vld [vmem:[%s3] sm:$0xf]
    %v220 = vld [vmem:[%s3 + $0x4] sm:$0xf]
    %v221 = vld [vmem:[%s3 + $0x8] sm:$0xf]
    %v222 = vld [vmem:[%s3 + $0xc] sm:$0xf]
    %v223 = vld [vmem:[%s3 + $0x10] sm:$0xf]
    %v224 = vld [vmem:[%s3 + $0x14] sm:$0xf]
    %v225 = vld [vmem:[%s3 + $0x18] sm:$0xf]
    %v226 = vld [vmem:[%s3 + $0x1c] sm:$0xf]
    %v227 = vpack.c.bf16 %v205, %v203
    %v228 = vpack.c.bf16 %v206, %v204
    %v229 = vpack.c.bf16 %v209, %v207
    %v230 = vpack.c.bf16 %v210, %v208
    %v231 = vpack.c.bf16 %v213, %v211
    %v232 = vpack.c.bf16 %v214, %v212
    %v233 = vpack.c.bf16 %v217, %v215
    %v234 = vpack.c.bf16 %v218, %v216
    %v235 = vld [vmem:[%s4] sm:$0xff]
    %v236 = vld [vmem:[%s4 + $0x8] sm:$0xff]
    %v237 = vld [vmem:[%s4 + $0x10] sm:$0xff]
    %v238 = vld [vmem:[%s4 + $0x18] sm:$0xff]
    %v239 = vld [vmem:[%s4 + $0x20] sm:$0xff]
    %v240 = vld [vmem:[%s4 + $0x28] sm:$0xff]
    %v241 = vld [vmem:[%s4 + $0x30] sm:$0xff]
    %v242 = vld [vmem:[%s4 + $0x38] sm:$0xff]
    %244 = vset.pattern.permute.xlu0 0
    %245 = vperm.xlu0 %244, %v235
    %v246 = vpop.permute.xlu0 %245
    %249 = vset.pattern.permute.xlu0 0
    %250 = vperm.xlu0 %249, %v236
    %v251 = vpop.permute.xlu0 %250
    %254 = vset.pattern.permute.xlu0 0
    %255 = vperm.xlu0 %254, %v237
    %v256 = vpop.permute.xlu0 %255
    %259 = vset.pattern.permute.xlu0 0
    %260 = vperm.xlu0 %259, %v238
    %v261 = vpop.permute.xlu0 %260
    %264 = vset.pattern.permute.xlu0 0
    %265 = vperm.xlu0 %264, %v239
    %v266 = vpop.permute.xlu0 %265
    %269 = vset.pattern.permute.xlu0 0
    %270 = vperm.xlu0 %269, %v240
    %v271 = vpop.permute.xlu0 %270
    %274 = vset.pattern.permute.xlu0 0
    %275 = vperm.xlu0 %274, %v241
    %v276 = vpop.permute.xlu0 %275
    %279 = vset.pattern.permute.xlu0 0
    %280 = vperm.xlu0 %279, %v242
    %v281 = vpop.permute.xlu0 %280
    %v291 = vunpack.c.l.b16 %v219
    %v292 = vunpack.c.l.b16 %v220
    %v293 = vunpack.c.l.b16 %v221
    %v294 = vunpack.c.l.b16 %v222
    %v295 = vunpack.c.l.b16 %v223
    %v296 = vunpack.c.l.b16 %v224
    %v297 = vunpack.c.l.b16 %v225
    %v298 = vunpack.c.l.b16 %v226
    %v299 = vpack.c.b16 %v292, %v291
    %v300 = vpack.c.b16 %v294, %v293
    %v301 = vpack.c.b16 %v296, %v295
    %v302 = vpack.c.b16 %v298, %v297
    %vm303 = vcmask 523264
    %v305 = vsel %vm303, %v299, 0
    %v308 = vsel %vm303, %v300, 0
    %v311 = vsel %vm303, %v301, 0
    %v314 = vsel %vm303, %v302, 0
    %316 = vmatprep.subr.bf16.mxu0 %v228
    %317 = vmatpush1.bf16.msra.mxu0 %v227
    %318 = vmatprep.subr.bf16.mxu0 %v230
    %319 = vmatpush1.bf16.msra.mxu0 %v229
    %320 = vmatprep.subr.bf16.mxu0 %v232
    %321 = vmatpush1.bf16.msra.mxu0 %v231
    %322 = vmatprep.subr.bf16.mxu0 %v234
    %323 = vmatpush1.bf16.msra.mxu0 %v233
    %324 = vmatprep.subr.bf16.mxu0 0
    %325 = vmatpush1.bf16.msra.mxu0 0
    %326 = vmatprep.subr.bf16.mxu0 0
    %327 = vmatpush1.bf16.msra.mxu0 0
    %328 = vmatprep.subr.bf16.mxu0 0
    %329 = vmatpush1.bf16.msra.mxu0 0
    %330 = vmatprep.subr.bf16.mxu0 0
    %331 = vmatpush1.bf16.msra.mxu0 0
    %332 = vmatprep.subr.bf16.mxu0 0
    %333 = vmatpush1.bf16.msra.mxu0 0
    %334 = vmatprep.subr.bf16.mxu0 0
    %335 = vmatpush1.bf16.msra.mxu0 0
    %336 = vmatprep.subr.bf16.mxu0 0
    %337 = vmatpush1.bf16.msra.mxu0 0
    %338 = vmatprep.subr.bf16.mxu0 0
    %339 = vmatpush1.bf16.msra.mxu0 0
    %340 = vmatprep.subr.bf16.mxu0 0
    %341 = vmatpush1.bf16.msra.mxu0 0
    %342 = vmatprep.subr.bf16.mxu0 0
    %343 = vmatpush1.bf16.msra.mxu0 0
    %344 = vmatprep.subr.bf16.mxu0 0
    %345 = vmatpush1.bf16.msra.mxu0 0
    %346 = vmatprep.subr.bf16.mxu0 0
    %347 = vmatpush1.bf16.msra.mxu0 0
    %348 = vmatprep.mubr.bf16.mxu0 0
    %349 = vmatmul.mubr.bf16.gmra.mrb[0].mxu0 %v305
    %v350 = vpop.f32.mrb[0].mxu0
    %v351 = vadd.f32 %v246, %v350
    %v352 = vpop.f32.mrb[0].mxu0
    %v353 = vadd.f32 %v246, %v352
    %v354 = vpop.f32.mrb[0].mxu0
    %v355 = vadd.f32 %v251, %v354
    %v356 = vpop.f32.mrb[0].mxu0
    %v357 = vadd.f32 %v251, %v356
    %358 = vmatprep.mubr.bf16.mxu0 0
    %359 = vmatmul.mubr.bf16.gmra.mrb[0].mxu0 %v308
    %v360 = vpop.f32.mrb[0].mxu0
    %v361 = vadd.f32 %v256, %v360
    %v362 = vpop.f32.mrb[0].mxu0
    %v363 = vadd.f32 %v256, %v362
    %v364 = vpop.f32.mrb[0].mxu0
    %v365 = vadd.f32 %v261, %v364
    %v366 = vpop.f32.mrb[0].mxu0
    %v367 = vadd.f32 %v261, %v366
    %368 = vmatprep.mubr.bf16.mxu0 0
    %369 = vmatmul.mubr.bf16.gmra.mrb[0].mxu0 %v311
    %v370 = vpop.f32.mrb[0].mxu0
    %v371 = vadd.f32 %v266, %v370
    %v372 = vpop.f32.mrb[0].mxu0
    %v373 = vadd.f32 %v266, %v372
    %v374 = vpop.f32.mrb[0].mxu0
    %v375 = vadd.f32 %v271, %v374
    %v376 = vpop.f32.mrb[0].mxu0
    %v377 = vadd.f32 %v271, %v376
    %378 = vmatprep.mubr.bf16.mxu0 0
    %379 = vmatmul.mubr.bf16.gmra.mrb[0].mxu0 %v314
    %v380 = vpop.f32.mrb[0].mxu0
    %v381 = vadd.f32 %v276, %v380
    %v382 = vpop.f32.mrb[0].mxu0
    %v383 = vadd.f32 %v276, %v382
    %v384 = vpop.f32.mrb[0].mxu0
    %v385 = vadd.f32 %v281, %v384
    %v386 = vpop.f32.mrb[0].mxu0
    %v387 = vadd.f32 %v281, %v386
    %388 = vdwg.mxu0
    %v389 = vmax.f32 %v351, 0.0
    %v390 = vmax.f32 %v353, 0.0
    %v391 = vmax.f32 %v355, 0.0
    %v392 = vmax.f32 %v357, 0.0
    %v393 = vmax.f32 %v361, 0.0
    %v394 = vmax.f32 %v363, 0.0
    %v395 = vmax.f32 %v365, 0.0
    %v396 = vmax.f32 %v367, 0.0
    %v397 = vmax.f32 %v371, 0.0
    %v398 = vmax.f32 %v373, 0.0
    %v399 = vmax.f32 %v375, 0.0
    %v400 = vmax.f32 %v377, 0.0
    %v401 = vmax.f32 %v381, 0.0
    %v402 = vmax.f32 %v383, 0.0
    %v403 = vmax.f32 %v385, 0.0
    %v404 = vmax.f32 %v387, 0.0
    %v405 = vld [vmem:[%s5] sm:$0x1]
    %v406 = vpack.c.bf16 %v391, %v389
    %v407 = vpack.c.bf16 %v392, %v390
    %v408 = vpack.c.bf16 %v395, %v393
    %v409 = vpack.c.bf16 %v396, %v394
    %v410 = vpack.c.bf16 %v399, %v397
    %v411 = vpack.c.bf16 %v400, %v398
    %v412 = vpack.c.bf16 %v403, %v401
    %v413 = vpack.c.bf16 %v404, %v402
    %v414 = vld [vmem:[#allocation2] sm:$0x1]
    %416 = vset.pattern.permute.xlu0 0
    %417 = vperm.xlu0 %416, %v414
    %v418 = vpop.permute.xlu0 %417
    %v420 = vlaneseq
    %v421 = vshrl.u32 %v420, 7
    %v422 = vsub.s32 0, %v421
    %v423 = vrot.slane %v418, %v422
    %v425 = vsel %vm303, %v405, 0
    %427 = vmatprep.subr.bf16.mxu0 %v407
    %428 = vmatpush1.bf16.msra.mxu0 %v406
    %429 = vmatprep.subr.bf16.mxu0 %v409
    %430 = vmatpush1.bf16.msra.mxu0 %v408
    %431 = vmatprep.subr.bf16.mxu0 %v411
    %432 = vmatpush1.bf16.msra.mxu0 %v410
    %433 = vmatprep.subr.bf16.mxu0 %v413
    %434 = vmatpush1.bf16.msra.mxu0 %v412
    %435 = vmatprep.subr.bf16.mxu0 0
    %436 = vmatpush1.bf16.msra.mxu0 0
    %437 = vmatprep.subr.bf16.mxu0 0
    %438 = vmatpush1.bf16.msra.mxu0 0
    %439 = vmatprep.subr.bf16.mxu0 0
    %440 = vmatpush1.bf16.msra.mxu0 0
    %441 = vmatprep.subr.bf16.mxu0 0
    %442 = vmatpush1.bf16.msra.mxu0 0
    %443 = vmatprep.subr.bf16.mxu0 0
    %444 = vmatpush1.bf16.msra.mxu0 0
    %445 = vmatprep.subr.bf16.mxu0 0
    %446 = vmatpush1.bf16.msra.mxu0 0
    %447 = vmatprep.subr.bf16.mxu0 0
    %448 = vmatpush1.bf16.msra.mxu0 0
    %449 = vmatprep.subr.bf16.mxu0 0
    %450 = vmatpush1.bf16.msra.mxu0 0
    %451 = vmatprep.subr.bf16.mxu0 0
    %452 = vmatpush1.bf16.msra.mxu0 0
    %453 = vmatprep.subr.bf16.mxu0 0
    %454 = vmatpush1.bf16.msra.mxu0 0
    %455 = vmatprep.subr.bf16.mxu0 0
    %456 = vmatpush1.bf16.msra.mxu0 0
    %457 = vmatprep.subr.bf16.mxu0 0
    %458 = vmatpush1.bf16.msra.mxu0 0
    %459 = vmatprep.mubr.bf16.mxu0 0
    %460 = vmatmul.mubr.bf16.gmra.mrb[0].mxu0 %v425
    %v461 = vpop.f32.mrb[0].mxu0
    %v462 = vadd.f32 %v423, %v461
    %v463 = vpop.f32.mrb[0].mxu0
    %v464 = vadd.f32 %v423, %v463
    %v465 = vpop.f32.mrb[0].mxu0
    %v466 = vpop.f32.mrb[0].mxu0
    %467 = vdwg.mxu0
    %v470 = vcombine.low %v462, %v464
    %v472 = vunpack.c.l.s4 1966171168
    %v473 = vunpack.c.0.s8 %v472
    %v474 = vlaneseq
    %v475 = vshrl.u32 %v474, 7
    %v476 = vsub.s32 %v473, %v475
    %v477 = vrot.slane %v470, %v476
    %v479 = vunpack.c.l.s4 1966171168
    %v480 = vunpack.c.0.s8 %v479
    %v481 = vlaneseq
    %v482 = vshrl.u32 %v481, 7
    %v483 = vsub.s32 %v480, %v482
    %v484 = vrot.slane %v477, %v483
    %v486 = vlaneseq
    %vm487 = vcmp.ge.s32.totalorder %v486, 0
    %vm488 = vcmp.lt.s32.totalorder %v486, 256
    %vm489 = vmand %vm487, %vm488
    %490 = vst.msk [vmem:[#allocation3] sm:$0x3] %vm489, %v484
    // Predicated region
    $region30: #{tpu_custom_call.1} parent=1 // pred_check
      _
    $region31: #{tpu_custom_call.1} parent=1 // pred_check_branch
      %492 = sbr.rel (0) target = $region33
    $region32: #{tpu_custom_call.1} parent=1 // pred_region
      %s494 = ssub.s32 32, 32
      %495 = vsyncadd [#allocation4], %s494
      %s497 = sshll.u32 [#allocation3], 4
      %s498 = int_to_ptr.vmem [resolvable:$true] %s497
      %500 = dma.vmem_to_hbm [thread:$0]  %s498, 32, %s7, [#allocation4]
    $region33: #{tpu_custom_call.1} parent=1 // pred_fallthru
      _
    // Predicated region
    $region34: #{tpu_custom_call.1} parent=1 // pred_check
      _
    $region35: #{tpu_custom_call.1} parent=1 // pred_check_branch
      %502 = sbr.rel (0) target = $region37
    $region36: #{tpu_custom_call.1} parent=1 // pred_region
      %503 = dma.done [#allocation4], 32
    $region37: #{tpu_custom_call.1} parent=1 // pred_fallthru
      _
    %504 = vsyncpa [#allocation4], 1

</llo_original>
